<compile_context>
chip_gen: v5e
topology: v5e:2x2
jax: 0.10.0
libtpu: 0.0.40
codegen_flags: <defaults>
</compile_context>

<pallas_src>
import jax
import jax.numpy as jnp
from jax.experimental import pallas as pl
from jax.experimental.pallas import tpu as pltpu


# ----------------------------------------------------------------------------
# helpers
# ----------------------------------------------------------------------------
def _round_up(n: int, m: int) -> int:
    return ((n + m - 1) // m) * m


def _pad2d(a, rows: int, cols: int):
    r, c = a.shape
    if r == rows and c == cols:
        return a
    return jnp.pad(a, ((0, rows - r), (0, cols - c)))


def _leaky_relu(y):
    return jnp.where(y > 0, y, 0.2 * y)                      # VPU select


def _stable_sigmoid(y):
    # Overflow-free sigmoid: exp(-|y|) is in (0, 1], no inf intermediates.
    ey = jnp.exp(-jnp.abs(y))                                 # EUP
    num = jnp.where(y >= 0, 1.0, ey)
    return num / (1.0 + ey)


# ----------------------------------------------------------------------------
# Fused MLP kernel.
#   layer 0 : y = flat(bf16) @ W1_img(bf16)  + per-label-bias-rows (folded emb)
#   layer n : y = leaky(y)(bf16) @ Wn(bf16) + bn(f32)
#   last    : stable sigmoid, stored as bf16 slab.
# Accumulation and activations stay f32 throughout.
# ----------------------------------------------------------------------------
def _make_fused_mlp_kernel(num_layers: int):
    def kernel(*refs):
        flat_ref, bias_ref, w1_ref = refs[:3]
        layer_refs = refs[3:-1]          # (w2, b2, w3, b3, ...)
        o_ref = refs[-1]

        # Layer 0: image matmul + folded per-label bias (replaces concat+emb).
        y = jnp.dot(flat_ref[...], w1_ref[...],
                    preferred_element_type=jnp.float32)       # MXU bf16->f32
        y = y + bias_ref[...].astype(jnp.float32)             # VPU
        y = _stable_sigmoid(y) if num_layers == 1 else _leaky_relu(y)

        # Remaining layers stay entirely in registers / VMEM.
        for n in range(1, num_layers):
            w_ref = layer_refs[2 * (n - 1)]
            b_ref = layer_refs[2 * (n - 1) + 1]
            y = jnp.dot(y.astype(w_ref.dtype), w_ref[...],
                        preferred_element_type=jnp.float32) + b_ref[...]
            y = _stable_sigmoid(y) if n == num_layers - 1 else _leaky_relu(y)

        o_ref[...] = y.astype(o_ref.dtype)

    return kernel


# ----------------------------------------------------------------------------
# Discriminator (parameter construction + thin glue in plain JAX)
# ----------------------------------------------------------------------------
class Discriminator:
    # Conservative per-tile VMEM budget: fits v5e's 16 MiB default scoped VMEM
    # and leaves ample headroom under v7x's 64 MiB physical VMEM.
    _VMEM_BUDGET = 12 * 1024 * 1024
    _SUB = 16  # bf16 sublane granule

    def __init__(self, num_labels, num_layers, in_channels, out_channels,
                 kernel_sizes, strides, paddings, img_size=(16, 16), *, key):
        del kernel_sizes, strides, paddings  # unused for the MLP interpretation
        self.img_size = img_size
        self.num_labels = num_labels
        self.num_layers = num_layers
        self.out_dim = out_channels[-1]

        keys = jax.random.split(key, 2 * num_layers + 1)
        # nn.Embedding(num_labels, num_labels): weight ~ N(0, 1)
        self.emb_weight = jax.random.normal(
            keys[0], (num_labels, num_labels), dtype=jnp.float32)

        # in_channels[0] = flat_dim + num_labels  (concat of image + embedding)
        flat_dim = in_channels[0] - num_labels
        self.flat_dim = flat_dim

        # nn.Linear default init: U(-1/sqrt(fan_in), 1/sqrt(fan_in))
        raw = []
        for n in range(num_layers):
            fan_in = in_channels[n]
            bound = 1.0 / float(fan_in) ** 0.5
            w = jax.random.uniform(
                keys[2 * n + 1], (in_channels[n], out_channels[n]),
                minval=-bound, maxval=bound, dtype=jnp.float32)
            b = jax.random.uniform(
                keys[2 * n + 2], (1, out_channels[n]),
                minval=-bound, maxval=bound, dtype=jnp.float32)
            raw.append((w, b))

        # Lane-dense padding (multiples of 128). Zero padding is exact: padded
        # K-rows multiply zero activations, padded N-cols give 0 activations
        # (0 stays 0 through LeakyReLU) which later padded K-rows consume.
        self._flat_pad = _round_up(flat_dim, 128)
        self._h1_pad = _round_up(out_channels[0], 128)
        self._out_pad = _round_up(out_channels[-1], 128)

        w1, b1 = raw[0]
        w1_img, w1_emb = w1[:flat_dim], w1[flat_dim:]

        # Fold the label embedding into a per-label bias table (f32, exact):
        #   concat(flat, emb) @ W1 + b1 == flat @ W1_img + (emb @ W1_emb + b1)
        table = self.emb_weight @ w1_emb + b1          # (num_labels, out0)
        self.label_bias_table = _pad2d(table, num_labels, self._h1_pad)

        # Weights streamed as bf16 (accumulation stays f32); biases stay f32.
        params = [_pad2d(w1_img, self._flat_pad, self._h1_pad)
                  .astype(jnp.bfloat16)]
        per_row_flops = self._flat_pad * self._h1_pad
        for n in range(1, num_layers):
            w, b = raw[n]
            kp = _round_up(in_channels[n], 128)
            np_ = _round_up(out_channels[n], 128)
            params.append(_pad2d(w, kp, np_).astype(jnp.bfloat16))
            params.append(_pad2d(b, 1, np_))            # f32 bias
            per_row_flops += kp * np_
        self.params = params

        self._mm_flops_per_row = per_row_flops
        self._weight_bytes = sum(int(p.size) * p.dtype.itemsize for p in params)
        self._kernel = _make_fused_mlp_kernel(num_layers)
        self._single_buffer_ok = None    # feature-detect pl.Buffered(1) once

    def __repr__(self):
        return "Discriminator_CGAN_"

    # ------------------------------------------------------------------ tiling
    def _tile_fits(self, tile_m: int) -> bool:
        # double-buffered bf16 streams (image, bias rows, output) +
        # worst-case double-buffered weights.
        streams = 2 * tile_m * 2 * (self._flat_pad + self._h1_pad + self._out_pad)
        return streams + 2 * self._weight_bytes <= self._VMEM_BUDGET

    def _choose_tiling(self, B: int):
        """Returns (tile_m, Bp); both multiples of 16 (bf16 sublane granule)."""
        SUB = self._SUB
        Bmin = _round_up(max(B, SUB), SUB)
        if Bmin <= 256:
            # Small batch: one slab; split into two tiles when possible so the
            # "parallel" M axis shards across v7x's two TensorCores.
            if Bmin >= 2 * SUB and (Bmin // 2) % SUB == 0:
                return Bmin // 2, Bmin
            return Bmin, Bmin
        best = None
        for t in (512, 256, 128):
            if not self._tile_fits(t):
                continue
            Bp = _round_up(B, t)
            key = (Bp - B,                    # minimise padded-row waste
                   0 if Bp // t >= 2 else 1,  # prefer >= 2 tiles (v7x dual-TC)
                   -t)                        # then prefer the larger tile
            if best is None or key < best[0]:
                best = (key, t, Bp)
        if best is None:
            # TODO(synk): huge flat_dim — add a K grid axis over flat_pad with a
            # VMEM f32 accumulator instead of shrinking tile_m further.
            return 128, _round_up(B, 128)
        return best[1], best[2]

    # ---------------------------------------------------------------- pallas
    def _pallas_forward(self, flat_p, bias_p, tile_m, single_buffer_weights):
        Bp = flat_p.shape[0]
        num_m = Bp // tile_m

        def wspec(shape):
            # Grid-invariant weights: constant index map => no re-DMA across M
            # steps; Buffered(1) keeps a single VMEM copy instead of two.
            if single_buffer_weights:
                return pl.BlockSpec(shape, lambda i: (0, 0),
                                    pipeline_mode=pl.Buffered(1))
            return pl.BlockSpec(shape, lambda i: (0, 0))

        in_specs = [
            pl.BlockSpec((tile_m, self._flat_pad), lambda i: (i, 0)),
            pl.BlockSpec((tile_m, self._h1_pad), lambda i: (i, 0)),
        ]
        in_specs += [wspec(p.shape) for p in self.params]

        bytes_accessed = (flat_p.size * flat_p.dtype.itemsize
                          + bias_p.size * bias_p.dtype.itemsize
                          + self._weight_bytes
                          + Bp * self._out_pad * 2)
        cost = pl.CostEstimate(flops=2 * Bp * self._mm_flops_per_row,
                               transcendentals=Bp * self._out_pad,
                               bytes_accessed=bytes_accessed)

        return pl.pallas_call(
            self._kernel,
            out_shape=jax.ShapeDtypeStruct((Bp, self._out_pad), jnp.bfloat16),
            grid=(num_m,),
            in_specs=in_specs,
            out_specs=pl.BlockSpec((tile_m, self._out_pad), lambda i: (i, 0)),
            compiler_params=pltpu.CompilerParams(
                dimension_semantics=("parallel",)),
            cost_estimate=cost,
        )(flat_p, bias_p, *self.params)

    # ---------------------------------------------------------------- forward
    def __call__(self, img, labels):
        B = img.shape[0]
        # img.view(B, -1); streamed as bf16 (accumulation stays f32 in-kernel).
        flat = img.reshape(B, -1).astype(jnp.bfloat16)
        # Folded embedding: gather the per-label layer-0 bias rows (glue op).
        bias_rows = jnp.take(self.label_bias_table, labels, axis=0)
        bias_rows = bias_rows.astype(jnp.bfloat16)

        tile_m, Bp = self._choose_tiling(B)
        flat_p = _pad2d(flat, Bp, self._flat_pad)
        bias_p = _pad2d(bias_rows, Bp, self._h1_pad)

        if self._single_buffer_ok is not False:
            try:
                out_p = self._pallas_forward(flat_p, bias_p, tile_m, True)
                self._single_buffer_ok = True
            except Exception:
                # pl.Buffered(1) not accepted by this jax build — fall back to
                # default double-buffering (correctness identical).
                self._single_buffer_ok = False
                out_p = self._pallas_forward(flat_p, bias_p, tile_m, False)
        else:
            out_p = self._pallas_forward(flat_p, bias_p, tile_m, False)

        # Slice away batch/lane padding: final probabilities are (B, out_dim).
        return out_p[:B, :self.out_dim].astype(jnp.float32)


# ----------------------------------------------------------------------------
if __name__ == "__main__":
    key = jax.random.PRNGKey(0)
    k_param, k_img, k_lab = jax.random.split(key, 3)

    # Small deterministic configuration.
    num_labels = 4
    img_size = (16, 16)
    B, C = 2, 1
    flat_plus_emb = C * img_size[0] * img_size[1] + num_labels  # 256 + 4 = 260

    num_layers = 3
    in_channels = [flat_plus_emb, 32, 32]
    out_channels = [32, 32, 1]
    kernel_sizes = [4, 4, 4]   # unused (MLP interpretation)
    strides = [2, 2, 2]        # unused
    paddings = [1, 1, 1]       # unused

    disc = Discriminator(num_labels, num_layers, in_channels, out_channels,
                         kernel_sizes, strides, paddings, img_size=img_size,
                         key=k_param)

    img = jax.random.normal(k_img, (B, C, *img_size), dtype=jnp.float32)  # NCHW
    labels = jax.random.randint(k_lab, (B,), 0, num_labels, dtype=jnp.int32)

    out = disc(img, labels)
    out = jax.block_until_ready(out)
    assert out.shape == (B, 1)
    assert bool(jnp.all((out >= 0.0) & (out <= 1.0)))  # sigmoid output range
    print("KERNEL_OK")
</pallas_src>

<mosaic_0001>
module attributes {stable_mosaic.version = 11 : i64} {
  func.func @kernel(%arg0: i32, %arg1: memref<16x256xbf16, #tpu.memory_space<vmem>>, %arg2: memref<16x128xbf16, #tpu.memory_space<vmem>>, %arg3: memref<256x128xbf16, #tpu.memory_space<vmem>>, %arg4: memref<128x128xbf16, #tpu.memory_space<vmem>>, %arg5: memref<1x128xf32, #tpu.memory_space<vmem>>, %arg6: memref<128x128xbf16, #tpu.memory_space<vmem>>, %arg7: memref<1x128xf32, #tpu.memory_space<vmem>>, %arg8: memref<16x128xbf16, #tpu.memory_space<vmem>>) attributes {dimension_semantics = [#tpu.dimension_semantics<parallel>], iteration_bounds = array<i64: 1>, scalar_prefetch = 0 : i64, scratch_operands = 0 : i64, tpu.core_type = #tpu.core_type<tc>, window_params = [{transform_indices = @transform_0, window_bounds = array<i64: 16, 256>}, {transform_indices = @transform_1, window_bounds = array<i64: 16, 128>}, {pipeline_mode = #tpu.pipeline_mode<synchronous>, transform_indices = @transform_2, window_bounds = array<i64: 256, 128>}, {pipeline_mode = #tpu.pipeline_mode<synchronous>, transform_indices = @transform_3, window_bounds = array<i64: 128, 128>}, {pipeline_mode = #tpu.pipeline_mode<synchronous>, transform_indices = @transform_4, window_bounds = array<i64: 1, 128>}, {pipeline_mode = #tpu.pipeline_mode<synchronous>, transform_indices = @transform_5, window_bounds = array<i64: 128, 128>}, {pipeline_mode = #tpu.pipeline_mode<synchronous>, transform_indices = @transform_6, window_bounds = array<i64: 1, 128>}, {transform_indices = @transform_7, window_bounds = array<i64: 16, 128>}]} {
    %c0 = arith.constant 0 : index
    %c0_0 = arith.constant 0 : index
    %0 = vector.load %arg1[%c0, %c0_0] : memref<16x256xbf16, #tpu.memory_space<vmem>>, vector<16x256xbf16>
    %c0_1 = arith.constant 0 : index
    %c0_2 = arith.constant 0 : index
    %1 = vector.load %arg3[%c0_1, %c0_2] : memref<256x128xbf16, #tpu.memory_space<vmem>>, vector<256x128xbf16>
    %cst = arith.constant dense<0.000000e+00> : vector<16x128xf32>
    %2 = tpu.matmul %0, %1, %cst {dimension_numbers = #tpu.dot_dimension_numbers<[1], [0], [0], [1], [0, 0, 1, 1], [], []>} : vector<16x256xbf16>, vector<256x128xbf16>, vector<16x128xf32> -> vector<16x128xf32>
    %c0_3 = arith.constant 0 : index
    %c0_4 = arith.constant 0 : index
    %3 = vector.load %arg2[%c0_3, %c0_4] : memref<16x128xbf16, #tpu.memory_space<vmem>>, vector<16x128xbf16>
    %4 = arith.extf %3 : vector<16x128xbf16> to vector<16x128xf32>
    %5 = arith.addf %2, %4 : vector<16x128xf32>
    %cst_5 = arith.constant 0.000000e+00 : f32
    %6 = vector.broadcast %cst_5 : f32 to vector<16x128xf32>
    %7 = arith.cmpf ogt, %5, %6 : vector<16x128xf32>
    %cst_6 = arith.constant 2.000000e-01 : f32
    %8 = vector.broadcast %cst_6 : f32 to vector<16x128xf32>
    %9 = arith.mulf %8, %5 : vector<16x128xf32>
    %10 = arith.select %7, %5, %9 : vector<16x128xi1>, vector<16x128xf32>
    %11 = arith.truncf %10 : vector<16x128xf32> to vector<16x128xbf16>
    %c0_7 = arith.constant 0 : index
    %c0_8 = arith.constant 0 : index
    %12 = vector.load %arg4[%c0_7, %c0_8] : memref<128x128xbf16, #tpu.memory_space<vmem>>, vector<128x128xbf16>
    %cst_9 = arith.constant dense<0.000000e+00> : vector<16x128xf32>
    %13 = tpu.matmul %11, %12, %cst_9 {dimension_numbers = #tpu.dot_dimension_numbers<[1], [0], [0], [1], [0, 0, 1, 1], [], []>} : vector<16x128xbf16>, vector<128x128xbf16>, vector<16x128xf32> -> vector<16x128xf32>
    %c0_10 = arith.constant 0 : index
    %c0_11 = arith.constant 0 : index
    %14 = vector.load %arg5[%c0_10, %c0_11] : memref<1x128xf32, #tpu.memory_space<vmem>>, vector<1x128xf32>
    %15 = vector.broadcast %14 : vector<1x128xf32> to vector<16x128xf32>
    %16 = arith.addf %13, %15 : vector<16x128xf32>
    %cst_12 = arith.constant 0.000000e+00 : f32
    %17 = vector.broadcast %cst_12 : f32 to vector<16x128xf32>
    %18 = arith.cmpf ogt, %16, %17 : vector<16x128xf32>
    %cst_13 = arith.constant 2.000000e-01 : f32
    %19 = vector.broadcast %cst_13 : f32 to vector<16x128xf32>
    %20 = arith.mulf %19, %16 : vector<16x128xf32>
    %21 = arith.select %18, %16, %20 : vector<16x128xi1>, vector<16x128xf32>
    %22 = arith.truncf %21 : vector<16x128xf32> to vector<16x128xbf16>
    %c0_14 = arith.constant 0 : index
    %c0_15 = arith.constant 0 : index
    %23 = vector.load %arg6[%c0_14, %c0_15] : memref<128x128xbf16, #tpu.memory_space<vmem>>, vector<128x128xbf16>
    %cst_16 = arith.constant dense<0.000000e+00> : vector<16x128xf32>
    %24 = tpu.matmul %22, %23, %cst_16 {dimension_numbers = #tpu.dot_dimension_numbers<[1], [0], [0], [1], [0, 0, 1, 1], [], []>} : vector<16x128xbf16>, vector<128x128xbf16>, vector<16x128xf32> -> vector<16x128xf32>
    %c0_17 = arith.constant 0 : index
    %c0_18 = arith.constant 0 : index
    %25 = vector.load %arg7[%c0_17, %c0_18] : memref<1x128xf32, #tpu.memory_space<vmem>>, vector<1x128xf32>
    %26 = vector.broadcast %25 : vector<1x128xf32> to vector<16x128xf32>
    %27 = arith.addf %24, %26 : vector<16x128xf32>
    %28 = math.absf %27 : vector<16x128xf32>
    %cst_19 = arith.constant 0.000000e+00 : f32
    %29 = vector.broadcast %cst_19 : f32 to vector<16x128xf32>
    %30 = arith.subf %29, %28 : vector<16x128xf32>
    %31 = math.exp %30 : vector<16x128xf32>
    %cst_20 = arith.constant 0.000000e+00 : f32
    %32 = vector.broadcast %cst_20 : f32 to vector<16x128xf32>
    %33 = arith.cmpf oge, %27, %32 : vector<16x128xf32>
    %cst_21 = arith.constant 1.000000e+00 : f32
    %34 = vector.broadcast %cst_21 : f32 to vector<16x128xf32>
    %35 = arith.select %33, %34, %31 : vector<16x128xi1>, vector<16x128xf32>
    %cst_22 = arith.constant 1.000000e+00 : f32
    %36 = vector.broadcast %cst_22 : f32 to vector<16x128xf32>
    %37 = arith.addf %36, %31 : vector<16x128xf32>
    %38 = arith.divf %35, %37 : vector<16x128xf32>
    %39 = arith.truncf %38 : vector<16x128xf32> to vector<16x128xbf16>
    %c0_23 = arith.constant 0 : index
    %c0_24 = arith.constant 0 : index
    %40 = vector.load %arg8[%c0_23, %c0_24] : memref<16x128xbf16, #tpu.memory_space<vmem>>, vector<16x128xbf16>
    tpu.vector_store %arg8[%c0_23, %c0_24], %39 {strides = array<i32>} : memref<16x128xbf16, #tpu.memory_space<vmem>>, vector<16x128xbf16>,
    return
  }
  func.func @transform_0(%arg0: i32) -> (i32, i32) {
    %c0_i32 = arith.constant 0 : i32
    %c0_i32_0 = arith.constant 0 : i32
    return %arg0, %c0_i32 : i32, i32
  }
  func.func @transform_1(%arg0: i32) -> (i32, i32) {
    %c0_i32 = arith.constant 0 : i32
    %c0_i32_0 = arith.constant 0 : i32
    return %arg0, %c0_i32 : i32, i32
  }
  func.func @transform_2(%arg0: i32) -> (i32, i32) {
    %c0_i32 = arith.constant 0 : i32
    %c0_i32_0 = arith.constant 0 : i32
    %c0_i32_1 = arith.constant 0 : i32
    return %c0_i32, %c0_i32_0 : i32, i32
  }
  func.func @transform_3(%arg0: i32) -> (i32, i32) {
    %c0_i32 = arith.constant 0 : i32
    %c0_i32_0 = arith.constant 0 : i32
    %c0_i32_1 = arith.constant 0 : i32
    return %c0_i32, %c0_i32_0 : i32, i32
  }
  func.func @transform_4(%arg0: i32) -> (i32, i32) {
    %c0_i32 = arith.constant 0 : i32
    %c0_i32_0 = arith.constant 0 : i32
    %c0_i32_1 = arith.constant 0 : i32
    return %c0_i32, %c0_i32_0 : i32, i32
  }
  func.func @transform_5(%arg0: i32) -> (i32, i32) {
    %c0_i32 = arith.constant 0 : i32
    %c0_i32_0 = arith.constant 0 : i32
    %c0_i32_1 = arith.constant 0 : i32
    return %c0_i32, %c0_i32_0 : i32, i32
  }
  func.func @transform_6(%arg0: i32) -> (i32, i32) {
    %c0_i32 = arith.constant 0 : i32
    %c0_i32_0 = arith.constant 0 : i32
    %c0_i32_1 = arith.constant 0 : i32
    return %c0_i32, %c0_i32_0 : i32, i32
  }
  func.func @transform_7(%arg0: i32) -> (i32, i32) {
    %c0_i32 = arith.constant 0 : i32
    %c0_i32_0 = arith.constant 0 : i32
    return %arg0, %c0_i32 : i32, i32
  }
}

module attributes {stable_mosaic.version = 11 : i64} {
  func.func @kernel(%arg0: i32, %arg1: memref<16x256xbf16, #tpu.memory_space<vmem>>, %arg2: memref<16x128xbf16, #tpu.memory_space<vmem>>, %arg3: memref<256x128xbf16, #tpu.memory_space<vmem>>, %arg4: memref<128x128xbf16, #tpu.memory_space<vmem>>, %arg5: memref<1x128xf32, #tpu.memory_space<vmem>>, %arg6: memref<128x128xbf16, #tpu.memory_space<vmem>>, %arg7: memref<1x128xf32, #tpu.memory_space<vmem>>, %arg8: memref<16x128xbf16, #tpu.memory_space<vmem>>) attributes {dimension_semantics = [#tpu.dimension_semantics<parallel>], iteration_bounds = array<i64: 1>, scalar_prefetch = 0 : i64, scratch_operands = 0 : i64, tpu.core_type = #tpu.core_type<tc>, window_params = [{transform_indices = @transform_0, window_bounds = array<i64: 16, 256>}, {transform_indices = @transform_1, window_bounds = array<i64: 16, 128>}, {pipeline_mode = #tpu.pipeline_mode<synchronous>, transform_indices = @transform_2, window_bounds = array<i64: 256, 128>}, {pipeline_mode = #tpu.pipeline_mode<synchronous>, transform_indices = @transform_3, window_bounds = array<i64: 128, 128>}, {pipeline_mode = #tpu.pipeline_mode<synchronous>, transform_indices = @transform_4, window_bounds = array<i64: 1, 128>}, {pipeline_mode = #tpu.pipeline_mode<synchronous>, transform_indices = @transform_5, window_bounds = array<i64: 128, 128>}, {pipeline_mode = #tpu.pipeline_mode<synchronous>, transform_indices = @transform_6, window_bounds = array<i64: 1, 128>}, {transform_indices = @transform_7, window_bounds = array<i64: 16, 128>}]} {
    %c0 = arith.constant 0 : index
    %c0_0 = arith.constant 0 : index
    %0 = vector.load %arg1[%c0, %c0_0] : memref<16x256xbf16, #tpu.memory_space<vmem>>, vector<16x256xbf16>
    %c0_1 = arith.constant 0 : index
    %c0_2 = arith.constant 0 : index
    %1 = vector.load %arg3[%c0_1, %c0_2] : memref<256x128xbf16, #tpu.memory_space<vmem>>, vector<256x128xbf16>
    %cst = arith.constant dense<0.000000e+00> : vector<16x128xf32>
    %2 = tpu.matmul %0, %1, %cst {dimension_numbers = #tpu.dot_dimension_numbers<[1], [0], [0], [1], [0, 0, 1, 1], [], []>} : vector<16x256xbf16>, vector<256x128xbf16>, vector<16x128xf32> -> vector<16x128xf32>
    %c0_3 = arith.constant 0 : index
    %c0_4 = arith.constant 0 : index
    %3 = vector.load %arg2[%c0_3, %c0_4] : memref<16x128xbf16, #tpu.memory_space<vmem>>, vector<16x128xbf16>
    %4 = arith.extf %3 : vector<16x128xbf16> to vector<16x128xf32>
    %5 = arith.addf %2, %4 : vector<16x128xf32>
    %cst_5 = arith.constant 0.000000e+00 : f32
    %6 = vector.broadcast %cst_5 : f32 to vector<16x128xf32>
    %7 = arith.cmpf ogt, %5, %6 : vector<16x128xf32>
    %cst_6 = arith.constant 2.000000e-01 : f32
    %8 = vector.broadcast %cst_6 : f32 to vector<16x128xf32>
    %9 = arith.mulf %8, %5 : vector<16x128xf32>
    %10 = arith.select %7, %5, %9 : vector<16x128xi1>, vector<16x128xf32>
    %11 = arith.truncf %10 : vector<16x128xf32> to vector<16x128xbf16>
    %c0_7 = arith.constant 0 : index
    %c0_8 = arith.constant 0 : index
    %12 = vector.load %arg4[%c0_7, %c0_8] : memref<128x128xbf16, #tpu.memory_space<vmem>>, vector<128x128xbf16>
    %cst_9 = arith.constant dense<0.000000e+00> : vector<16x128xf32>
    %13 = tpu.matmul %11, %12, %cst_9 {dimension_numbers = #tpu.dot_dimension_numbers<[1], [0], [0], [1], [0, 0, 1, 1], [], []>} : vector<16x128xbf16>, vector<128x128xbf16>, vector<16x128xf32> -> vector<16x128xf32>
    %c0_10 = arith.constant 0 : index
    %c0_11 = arith.constant 0 : index
    %14 = vector.load %arg5[%c0_10, %c0_11] : memref<1x128xf32, #tpu.memory_space<vmem>>, vector<1x128xf32>
    %15 = vector.broadcast %14 : vector<1x128xf32> to vector<16x128xf32>
    %16 = arith.addf %13, %15 : vector<16x128xf32>
    %cst_12 = arith.constant 0.000000e+00 : f32
    %17 = vector.broadcast %cst_12 : f32 to vector<16x128xf32>
    %18 = arith.cmpf ogt, %16, %17 : vector<16x128xf32>
    %cst_13 = arith.constant 2.000000e-01 : f32
    %19 = vector.broadcast %cst_13 : f32 to vector<16x128xf32>
    %20 = arith.mulf %19, %16 : vector<16x128xf32>
    %21 = arith.select %18, %16, %20 : vector<16x128xi1>, vector<16x128xf32>
    %22 = arith.truncf %21 : vector<16x128xf32> to vector<16x128xbf16>
    %c0_14 = arith.constant 0 : index
    %c0_15 = arith.constant 0 : index
    %23 = vector.load %arg6[%c0_14, %c0_15] : memref<128x128xbf16, #tpu.memory_space<vmem>>, vector<128x128xbf16>
    %cst_16 = arith.constant dense<0.000000e+00> : vector<16x128xf32>
    %24 = tpu.matmul %22, %23, %cst_16 {dimension_numbers = #tpu.dot_dimension_numbers<[1], [0], [0], [1], [0, 0, 1, 1], [], []>} : vector<16x128xbf16>, vector<128x128xbf16>, vector<16x128xf32> -> vector<16x128xf32>
    %c0_17 = arith.constant 0 : index
    %c0_18 = arith.constant 0 : index
    %25 = vector.load %arg7[%c0_17, %c0_18] : memref<1x128xf32, #tpu.memory_space<vmem>>, vector<1x128xf32>
    %26 = vector.broadcast %25 : vector<1x128xf32> to vector<16x128xf32>
    %27 = arith.addf %24, %26 : vector<16x128xf32>
    %28 = math.absf %27 : vector<16x128xf32>
    %cst_19 = arith.constant 0.000000e+00 : f32
    %29 = vector.broadcast %cst_19 : f32 to vector<16x128xf32>
    %30 = arith.subf %29, %28 : vector<16x128xf32>
    %31 = math.exp %30 : vector<16x128xf32>
    %cst_20 = arith.constant 0.000000e+00 : f32
    %32 = vector.broadcast %cst_20 : f32 to vector<16x128xf32>
    %33 = arith.cmpf oge, %27, %32 : vector<16x128xf32>
    %cst_21 = arith.constant 1.000000e+00 : f32
    %34 = vector.broadcast %cst_21 : f32 to vector<16x128xf32>
    %35 = arith.select %33, %34, %31 : vector<16x128xi1>, vector<16x128xf32>
    %cst_22 = arith.constant 1.000000e+00 : f32
    %36 = vector.broadcast %cst_22 : f32 to vector<16x128xf32>
    %37 = arith.addf %36, %31 : vector<16x128xf32>
    %38 = arith.divf %35, %37 : vector<16x128xf32>
    %39 = arith.truncf %38 : vector<16x128xf32> to vector<16x128xbf16>
    %c0_23 = arith.constant 0 : index
    %c0_24 = arith.constant 0 : index
    %40 = vector.load %arg8[%c0_23, %c0_24] : memref<16x128xbf16, #tpu.memory_space<vmem>>, vector<16x128xbf16>
    tpu.vector_store %arg8[%c0_23, %c0_24], %39 {strides = array<i32>} : memref<16x128xbf16, #tpu.memory_space<vmem>>, vector<16x128xbf16>,
    return
  }
  func.func @transform_0(%arg0: i32) -> (i32, i32) {
    %c0_i32 = arith.constant 0 : i32
    %c0_i32_0 = arith.constant 0 : i32
    return %arg0, %c0_i32 : i32, i32
  }
  func.func @transform_1(%arg0: i32) -> (i32, i32) {
    %c0_i32 = arith.constant 0 : i32
    %c0_i32_0 = arith.constant 0 : i32
    return %arg0, %c0_i32 : i32, i32
  }
  func.func @transform_2(%arg0: i32) -> (i32, i32) {
    %c0_i32 = arith.constant 0 : i32
    %c0_i32_0 = arith.constant 0 : i32
    %c0_i32_1 = arith.constant 0 : i32
    return %c0_i32, %c0_i32_0 : i32, i32
  }
  func.func @transform_3(%arg0: i32) -> (i32, i32) {
    %c0_i32 = arith.constant 0 : i32
    %c0_i32_0 = arith.constant 0 : i32
    %c0_i32_1 = arith.constant 0 : i32
    return %c0_i32, %c0_i32_0 : i32, i32
  }
  func.func @transform_4(%arg0: i32) -> (i32, i32) {
    %c0_i32 = arith.constant 0 : i32
    %c0_i32_0 = arith.constant 0 : i32
    %c0_i32_1 = arith.constant 0 : i32
    return %c0_i32, %c0_i32_0 : i32, i32
  }
  func.func @transform_5(%arg0: i32) -> (i32, i32) {
    %c0_i32 = arith.constant 0 : i32
    %c0_i32_0 = arith.constant 0 : i32
    %c0_i32_1 = arith.constant 0 : i32
    return %c0_i32, %c0_i32_0 : i32, i32
  }
  func.func @transform_6(%arg0: i32) -> (i32, i32) {
    %c0_i32 = arith.constant 0 : i32
    %c0_i32_0 = arith.constant 0 : i32
    %c0_i32_1 = arith.constant 0 : i32
    return %c0_i32, %c0_i32_0 : i32, i32
  }
  func.func @transform_7(%arg0: i32) -> (i32, i32) {
    %c0_i32 = arith.constant 0 : i32
    %c0_i32_0 = arith.constant 0 : i32
    return %arg0, %c0_i32 : i32, i32
  }
}

</mosaic_0001>

<llo_original>
// kernel: tpu_custom_call.1
$region0: #{tpu_custom_call.1}
  #allocation0 [shape = 'u32[]', space=smem, size = 0x4, offset = 0x4, fixed_abs, tag = 'smem constant byte address 0x4 - core index']
  #allocation1 [shape = 'u32[72,128]{1,0:T(1,128)}', space=vmem, size = 0x9000, scoped, tag = 'internal scratch']
  %s0 = inlined_call_operand.hbm [shape: bf16[16,256], index: 0, kind: input, shape index: {}]
  %s1 = inlined_call_operand.hbm [shape: bf16[16,128], index: 1, kind: input, shape index: {}]
  %s2 = inlined_call_operand.hbm [shape: bf16[256,128], index: 2, kind: input, shape index: {}]
  %s3 = inlined_call_operand.hbm [shape: bf16[128,128], index: 3, kind: input, shape index: {}]
  %s4 = inlined_call_operand.vmem [shape: f32[1,128], index: 4, kind: input, shape index: {}]
  %s5 = inlined_call_operand.hbm [shape: bf16[128,128], index: 5, kind: input, shape index: {}]
  %s6 = inlined_call_operand.vmem [shape: f32[1,128], index: 6, kind: input, shape index: {}]
  %s7 = inlined_call_operand.hbm [shape: bf16[16,128], index: 7, kind: output, shape index: {}]
  %s8 = sld [smem:[#allocation0]]
  $region58: #{tpu_custom_call.1} parent=0
    _
  %s10 = ssub.s32 1, %s8
  %s11 = scalar_select 0, %s10, %s8
  $region1: #{tpu_custom_call.1} parent=0
    #allocation2 [shape = 'u8[8192]{0}', space=vmem, size = 0x2000, scoped, tag = 'input window, operand 0, single buffered']
    #allocation3 [shape = 's32[1]{0}', space=sflag, size = 0x4, scoped, tag = 'scoped memory for tpu_custom_call.1']
    #allocation4 [shape = 's32[1]{0}', space=sflag, size = 0x4, scoped, tag = 'scoped memory for tpu_custom_call.1']
    #allocation5 [shape = 'u8[4096]{0}', space=vmem, size = 0x1000, scoped, tag = 'input window, operand 1, single buffered']
    #allocation6 [shape = 's32[1]{0}', space=sflag, size = 0x4, scoped, tag = 'scoped memory for tpu_custom_call.1']
    #allocation7 [shape = 'u8[65536]{0}', space=vmem, size = 0x10000, scoped, tag = 'input window, operand 2, single buffered']
    #allocation8 [shape = 'u8[32768]{0}', space=vmem, size = 0x8000, scoped, tag = 'input window, operand 3, single buffered']
    #allocation9 [shape = 's32[1]{0}', space=sflag, size = 0x4, scoped, tag = 'scoped memory for tpu_custom_call.1']
    #allocation10 [shape = 'u8[32768]{0}', space=vmem, size = 0x8000, scoped, tag = 'input window, operand 5, single buffered']
    #allocation11 [shape = 'u8[4096]{0}', space=vmem, size = 0x1000, scoped, tag = 'output window, operand 0, single buffered']
    %12 = vsyncpa [#allocation3], 0
    %13 = vsyncpa [#allocation6], 0
    %14 = vsyncpa [#allocation9], 0
    %15 = vsyncpa [#allocation4], 0
    // Predicated region
    $region2: #{tpu_custom_call.1} parent=1 // pred_check
      _
    $region3: #{tpu_custom_call.1} parent=1 // pred_check_branch
      %17 = sbr.rel (0) target = $region5
    $region4: #{tpu_custom_call.1} parent=1 // pred_region
      %19 = vsyncadd [#allocation3], 0
      %s20 = sshll.u32 %s0, 4
      %s21 = int_to_ptr.hbm [resolvable:$true] %s20
      %s22 = sshll.u32 [#allocation2], 4
      %s23 = int_to_ptr.vmem [resolvable:$true] %s22
      %28 = dma.hbm_to_vmem [thread:$0]  %s21, 256, %s23, [#allocation3], 128, 128, 8
    $region5: #{tpu_custom_call.1} parent=1 // pred_fallthru
      _
    // Predicated region
    $region6: #{tpu_custom_call.1} parent=1 // pred_check
      _
    $region7: #{tpu_custom_call.1} parent=1 // pred_check_branch
      %30 = sbr.rel (0) target = $region9
    $region8: #{tpu_custom_call.1} parent=1 // pred_region
      %32 = vsyncadd [#allocation6], 0
      %s33 = sshll.u32 %s1, 4
      %s34 = int_to_ptr.hbm [resolvable:$true] %s33
      %s35 = sshll.u32 [#allocation5], 4
      %s36 = int_to_ptr.vmem [resolvable:$true] %s35
      %41 = dma.hbm_to_vmem [thread:$0]  %s34, 128, %s36, [#allocation6], 64, 64, 4
    $region9: #{tpu_custom_call.1} parent=1 // pred_fallthru
      _
    // Predicated region
    $region10: #{tpu_custom_call.1} parent=1 // pred_check
      _
    $region11: #{tpu_custom_call.1} parent=1 // pred_check_branch
      %43 = sbr.rel (0) target = $region13
    $region12: #{tpu_custom_call.1} parent=1 // pred_region
      %45 = vsyncadd [#allocation6], 0
      %s46 = sshll.u32 %s2, 4
      %s47 = int_to_ptr.hbm [resolvable:$true] %s46
      %s48 = sshll.u32 [#allocation7], 4
      %s49 = int_to_ptr.vmem [resolvable:$true] %s48
      %54 = dma.hbm_to_vmem [thread:$0]  %s47, 2048, %s49, [#allocation6], 64, 64, 4
    $region13: #{tpu_custom_call.1} parent=1 // pred_fallthru
      _
    // Predicated region
    $region14: #{tpu_custom_call.1} parent=1 // pred_check
      _
    $region15: #{tpu_custom_call.1} parent=1 // pred_check_branch
      %56 = sbr.rel (0) target = $region17
    $region16: #{tpu_custom_call.1} parent=1 // pred_region
      %58 = vsyncadd [#allocation9], 0
      %s59 = sshll.u32 %s3, 4
      %s60 = int_to_ptr.hbm [resolvable:$true] %s59
      %s61 = sshll.u32 [#allocation8], 4
      %s62 = int_to_ptr.vmem [resolvable:$true] %s61
      %67 = dma.hbm_to_vmem [thread:$0]  %s60, 1024, %s62, [#allocation9], 64, 64, 4
    $region17: #{tpu_custom_call.1} parent=1 // pred_fallthru
      _
    // Predicated region
    $region18: #{tpu_custom_call.1} parent=1 // pred_check
      _
    $region19: #{tpu_custom_call.1} parent=1 // pred_check_branch
      %69 = sbr.rel (0) target = $region21
    $region20: #{tpu_custom_call.1} parent=1 // pred_region
      _
    $region21: #{tpu_custom_call.1} parent=1 // pred_fallthru
      _
    // Predicated region
    $region22: #{tpu_custom_call.1} parent=1 // pred_check
      _
    $region23: #{tpu_custom_call.1} parent=1 // pred_check_branch
      %71 = sbr.rel (0) target = $region25
    $region24: #{tpu_custom_call.1} parent=1 // pred_region
      %73 = vsyncadd [#allocation9], 0
      %s74 = sshll.u32 %s5, 4
      %s75 = int_to_ptr.hbm [resolvable:$true] %s74
      %s76 = sshll.u32 [#allocation10], 4
      %s77 = int_to_ptr.vmem [resolvable:$true] %s76
      %82 = dma.hbm_to_vmem [thread:$0]  %s75, 1024, %s77, [#allocation9], 64, 64, 4
    $region25: #{tpu_custom_call.1} parent=1 // pred_fallthru
      _
    // Predicated region
    $region26: #{tpu_custom_call.1} parent=1 // pred_check
      _
    $region27: #{tpu_custom_call.1} parent=1 // pred_check_branch
      %84 = sbr.rel (0) target = $region29
    $region28: #{tpu_custom_call.1} parent=1 // pred_region
      _
    $region29: #{tpu_custom_call.1} parent=1 // pred_fallthru
      _
    // Predicated region
    $region30: #{tpu_custom_call.1} parent=1 // pred_check
      _
    $region31: #{tpu_custom_call.1} parent=1 // pred_check_branch
      %86 = sbr.rel (0) target = $region33
    $region32: #{tpu_custom_call.1} parent=1 // pred_region
      %88 = dma.done [#allocation3], 256
    $region33: #{tpu_custom_call.1} parent=1 // pred_fallthru
      _
    // Predicated region
    $region34: #{tpu_custom_call.1} parent=1 // pred_check
      _
    $region35: #{tpu_custom_call.1} parent=1 // pred_check_branch
      %90 = sbr.rel (0) target = $region37
    $region36: #{tpu_custom_call.1} parent=1 // pred_region
      %92 = dma.done [#allocation6], 128
    $region37: #{tpu_custom_call.1} parent=1 // pred_fallthru
      _
    // Predicated region
    $region38: #{tpu_custom_call.1} parent=1 // pred_check
      _
    $region39: #{tpu_custom_call.1} parent=1 // pred_check_branch
      %94 = sbr.rel (0) target = $region41
    $region40: #{tpu_custom_call.1} parent=1 // pred_region
      %96 = dma.done [#allocation6], 2048
    $region41: #{tpu_custom_call.1} parent=1 // pred_fallthru
      _
    // Predicated region
    $region42: #{tpu_custom_call.1} parent=1 // pred_check
      _
    $region43: #{tpu_custom_call.1} parent=1 // pred_check_branch
      %98 = sbr.rel (0) target = $region45
    $region44: #{tpu_custom_call.1} parent=1 // pred_region
      %100 = dma.done [#allocation9], 1024
    $region45: #{tpu_custom_call.1} parent=1 // pred_fallthru
      _
    // Predicated region
    $region46: #{tpu_custom_call.1} parent=1 // pred_check
      _
    $region47: #{tpu_custom_call.1} parent=1 // pred_check_branch
      %102 = sbr.rel (0) target = $region49
    $region48: #{tpu_custom_call.1} parent=1 // pred_region
      %104 = dma.done [#allocation9], 1024
    $region49: #{tpu_custom_call.1} parent=1 // pred_fallthru
      _
    %v105 = vld [vmem:[#allocation2] sm:$0xff]
    %v106 = vld [vmem:[#allocation2 + $0x8] sm:$0xff]
    %v107 = vld [vmem:[#allocation7] sm:$0xf]
    %v108 = vld [vmem:[#allocation7 + $0x4] sm:$0xf]
    %v109 = vld [vmem:[#allocation7 + $0x8] sm:$0xf]
    %v110 = vld [vmem:[#allocation7 + $0xc] sm:$0xf]
    %v111 = vld [vmem:[#allocation7 + $0x10] sm:$0xf]
    %v112 = vld [vmem:[#allocation7 + $0x14] sm:$0xf]
    %v113 = vld [vmem:[#allocation7 + $0x18] sm:$0xf]
    %v114 = vld [vmem:[#allocation7 + $0x1c] sm:$0xf]
    %v115 = vld [vmem:[#allocation7 + $0x20] sm:$0xf]
    %v116 = vld [vmem:[#allocation7 + $0x24] sm:$0xf]
    %v117 = vld [vmem:[#allocation7 + $0x28] sm:$0xf]
    %v118 = vld [vmem:[#allocation7 + $0x2c] sm:$0xf]
    %v119 = vld [vmem:[#allocation7 + $0x30] sm:$0xf]
    %v120 = vld [vmem:[#allocation7 + $0x34] sm:$0xf]
    %v121 = vld [vmem:[#allocation7 + $0x38] sm:$0xf]
    %v122 = vld [vmem:[#allocation7 + $0x3c] sm:$0xf]
    %v123 = vld [vmem:[#allocation7 + $0x40] sm:$0xf]
    %v124 = vld [vmem:[#allocation7 + $0x44] sm:$0xf]
    %v125 = vld [vmem:[#allocation7 + $0x48] sm:$0xf]
    %v126 = vld [vmem:[#allocation7 + $0x4c] sm:$0xf]
    %v127 = vld [vmem:[#allocation7 + $0x50] sm:$0xf]
    %v128 = vld [vmem:[#allocation7 + $0x54] sm:$0xf]
    %v129 = vld [vmem:[#allocation7 + $0x58] sm:$0xf]
    %v130 = vld [vmem:[#allocation7 + $0x5c] sm:$0xf]
    %v131 = vld [vmem:[#allocation7 + $0x60] sm:$0xf]
    %v132 = vld [vmem:[#allocation7 + $0x64] sm:$0xf]
    %v133 = vld [vmem:[#allocation7 + $0x68] sm:$0xf]
    %v134 = vld [vmem:[#allocation7 + $0x6c] sm:$0xf]
    %v135 = vld [vmem:[#allocation7 + $0x70] sm:$0xf]
    %v136 = vld [vmem:[#allocation7 + $0x74] sm:$0xf]
    %v137 = vld [vmem:[#allocation7 + $0x78] sm:$0xf]
    %v138 = vld [vmem:[#allocation7 + $0x7c] sm:$0xf]
    %v139 = vld [vmem:[#allocation5] sm:$0xf]
    %v140 = vld [vmem:[#allocation5 + $0x4] sm:$0xf]
    %v141 = vunpack.c.l.bf16 %v139
    %v142 = vunpack.c.l.bf16 %v140
    %v145 = vunpack.c.l.b16 %v105
    %v146 = vunpack.c.h.b16 %v105
    %v147 = vunpack.c.l.b16 %v106
    %v148 = vunpack.c.h.b16 %v106
    %v149 = vpack.c.b16 %v147, %v145
    %v150 = vpack.c.b16 %v148, %v146
    %v185 = vunpack.c.l.b16 %v107
    %v186 = vunpack.c.l.b16 %v108
    %v187 = vunpack.c.l.b16 %v109
    %v188 = vunpack.c.l.b16 %v110
    %v189 = vunpack.c.l.b16 %v111
    %v190 = vunpack.c.l.b16 %v112
    %v191 = vunpack.c.l.b16 %v113
    %v192 = vunpack.c.l.b16 %v114
    %v193 = vunpack.c.l.b16 %v115
    %v194 = vunpack.c.l.b16 %v116
    %v195 = vunpack.c.l.b16 %v117
    %v196 = vunpack.c.l.b16 %v118
    %v197 = vunpack.c.l.b16 %v119
    %v198 = vunpack.c.l.b16 %v120
    %v199 = vunpack.c.l.b16 %v121
    %v200 = vunpack.c.l.b16 %v122
    %v201 = vunpack.c.l.b16 %v123
    %v202 = vunpack.c.l.b16 %v124
    %v203 = vunpack.c.l.b16 %v125
    %v204 = vunpack.c.l.b16 %v126
    %v205 = vunpack.c.l.b16 %v127
    %v206 = vunpack.c.l.b16 %v128
    %v207 = vunpack.c.l.b16 %v129
    %v208 = vunpack.c.l.b16 %v130
    %v209 = vunpack.c.l.b16 %v131
    %v210 = vunpack.c.l.b16 %v132
    %v211 = vunpack.c.l.b16 %v133
    %v212 = vunpack.c.l.b16 %v134
    %v213 = vunpack.c.l.b16 %v135
    %v214 = vunpack.c.l.b16 %v136
    %v215 = vunpack.c.l.b16 %v137
    %v216 = vunpack.c.l.b16 %v138
    %v217 = vpack.c.b16 %v186, %v185
    %v218 = vpack.c.b16 %v188, %v187
    %v219 = vpack.c.b16 %v190, %v189
    %v220 = vpack.c.b16 %v192, %v191
    %v221 = vpack.c.b16 %v194, %v193
    %v222 = vpack.c.b16 %v196, %v195
    %v223 = vpack.c.b16 %v198, %v197
    %v224 = vpack.c.b16 %v200, %v199
    %v225 = vpack.c.b16 %v202, %v201
    %v226 = vpack.c.b16 %v204, %v203
    %v227 = vpack.c.b16 %v206, %v205
    %v228 = vpack.c.b16 %v208, %v207
    %v229 = vpack.c.b16 %v210, %v209
    %v230 = vpack.c.b16 %v212, %v211
    %v231 = vpack.c.b16 %v214, %v213
    %v232 = vpack.c.b16 %v216, %v215
    %249 = vmatpush.bf16.msra.mxu0 %v224
    %250 = vmatpush.bf16.msra.mxu0 %v223
    %251 = vmatpush.bf16.msra.mxu0 %v222
    %252 = vmatpush.bf16.msra.mxu0 %v221
    %253 = vmatpush.bf16.msra.mxu0 %v220
    %254 = vmatpush.bf16.msra.mxu0 %v219
    %255 = vmatpush.bf16.msra.mxu0 %v218
    %256 = vmatpush.bf16.msra.mxu0 %v217
    %257 = vmatmul.bf16.gmra.mxu0 %v149
    %v258 = vpop.f32.mrf.mxu0
    %v259 = vadd.f32 %v141, %v258
    %v260 = vpop.f32.mrf.mxu0
    %v261 = vadd.f32 %v142, %v260
    %262 = vdwg.mxu0
    %263 = vmatpush.bf16.msra.mxu0 %v232
    %264 = vmatpush.bf16.msra.mxu0 %v231
    %265 = vmatpush.bf16.msra.mxu0 %v230
    %266 = vmatpush.bf16.msra.mxu0 %v229
    %267 = vmatpush.bf16.msra.mxu0 %v228
    %268 = vmatpush.bf16.msra.mxu0 %v227
    %269 = vmatpush.bf16.msra.mxu0 %v226
    %270 = vmatpush.bf16.msra.mxu0 %v225
    %271 = vmatmul.bf16.gmra.mxu0 %v150
    %v272 = vpop.f32.mrf.mxu0
    %v273 = vadd.f32 %v259, %v272
    %v274 = vpop.f32.mrf.mxu0
    %v275 = vadd.f32 %v261, %v274
    %276 = vdwg.mxu0
    %vm277 = vcmp.gt.f32.partialorder %v273, 0.0
    %vm278 = vcmp.gt.f32.partialorder %v275, 0.0
    %v279 = vmul.f32 %v273, 0.2
    %v280 = vmul.f32 %v275, 0.2
    %v281 = vsel %vm277, %v273, %v279
    %v282 = vsel %vm278, %v275, %v280
    %v283 = vpack.c.bf16 %v282, %v281
    %v284 = vld [vmem:[#allocation8] sm:$0xf]
    %v285 = vld [vmem:[#allocation8 + $0x4] sm:$0xf]
    %v286 = vld [vmem:[#allocation8 + $0x8] sm:$0xf]
    %v287 = vld [vmem:[#allocation8 + $0xc] sm:$0xf]
    %v288 = vld [vmem:[#allocation8 + $0x10] sm:$0xf]
    %v289 = vld [vmem:[#allocation8 + $0x14] sm:$0xf]
    %v290 = vld [vmem:[#allocation8 + $0x18] sm:$0xf]
    %v291 = vld [vmem:[#allocation8 + $0x1c] sm:$0xf]
    %v292 = vld [vmem:[#allocation8 + $0x20] sm:$0xf]
    %v293 = vld [vmem:[#allocation8 + $0x24] sm:$0xf]
    %v294 = vld [vmem:[#allocation8 + $0x28] sm:$0xf]
    %v295 = vld [vmem:[#allocation8 + $0x2c] sm:$0xf]
    %v296 = vld [vmem:[#allocation8 + $0x30] sm:$0xf]
    %v297 = vld [vmem:[#allocation8 + $0x34] sm:$0xf]
    %v298 = vld [vmem:[#allocation8 + $0x38] sm:$0xf]
    %v299 = vld [vmem:[#allocation8 + $0x3c] sm:$0xf]
    %v300 = vld [vmem:[%s4] sm:$0x1]
    %v302 = vperm.slane %v300, 0
    %v320 = vunpack.c.l.b16 %v284
    %v321 = vunpack.c.l.b16 %v285
    %v322 = vunpack.c.l.b16 %v286
    %v323 = vunpack.c.l.b16 %v287
    %v324 = vunpack.c.l.b16 %v288
    %v325 = vunpack.c.l.b16 %v289
    %v326 = vunpack.c.l.b16 %v290
    %v327 = vunpack.c.l.b16 %v291
    %v328 = vunpack.c.l.b16 %v292
    %v329 = vunpack.c.l.b16 %v293
    %v330 = vunpack.c.l.b16 %v294
    %v331 = vunpack.c.l.b16 %v295
    %v332 = vunpack.c.l.b16 %v296
    %v333 = vunpack.c.l.b16 %v297
    %v334 = vunpack.c.l.b16 %v298
    %v335 = vunpack.c.l.b16 %v299
    %v336 = vpack.c.b16 %v321, %v320
    %v337 = vpack.c.b16 %v323, %v322
    %v338 = vpack.c.b16 %v325, %v324
    %v339 = vpack.c.b16 %v327, %v326
    %v340 = vpack.c.b16 %v329, %v328
    %v341 = vpack.c.b16 %v331, %v330
    %v342 = vpack.c.b16 %v333, %v332
    %v343 = vpack.c.b16 %v335, %v334
    %352 = vmatpush.bf16.msra.mxu0 %v343
    %353 = vmatpush.bf16.msra.mxu0 %v342
    %354 = vmatpush.bf16.msra.mxu0 %v341
    %355 = vmatpush.bf16.msra.mxu0 %v340
    %356 = vmatpush.bf16.msra.mxu0 %v339
    %357 = vmatpush.bf16.msra.mxu0 %v338
    %358 = vmatpush.bf16.msra.mxu0 %v337
    %359 = vmatpush.bf16.msra.mxu0 %v336
    %360 = vmatmul.bf16.gmra.mxu0 %v283
    %v361 = vpop.f32.mrf.mxu0
    %v362 = vadd.f32 %v302, %v361
    %v363 = vpop.f32.mrf.mxu0
    %v364 = vadd.f32 %v302, %v363
    %365 = vdwg.mxu0
    %vm366 = vcmp.gt.f32.partialorder %v362, 0.0
    %vm367 = vcmp.gt.f32.partialorder %v364, 0.0
    %v368 = vmul.f32 %v362, 0.2
    %v369 = vmul.f32 %v364, 0.2
    %v370 = vsel %vm366, %v362, %v368
    %v371 = vsel %vm367, %v364, %v369
    %v372 = vpack.c.bf16 %v371, %v370
    %v373 = vld [vmem:[#allocation10] sm:$0xf]
    %v374 = vld [vmem:[#allocation10 + $0x4] sm:$0xf]
    %v375 = vld [vmem:[#allocation10 + $0x8] sm:$0xf]
    %v376 = vld [vmem:[#allocation10 + $0xc] sm:$0xf]
    %v377 = vld [vmem:[#allocation10 + $0x10] sm:$0xf]
    %v378 = vld [vmem:[#allocation10 + $0x14] sm:$0xf]
    %v379 = vld [vmem:[#allocation10 + $0x18] sm:$0xf]
    %v380 = vld [vmem:[#allocation10 + $0x1c] sm:$0xf]
    %v381 = vld [vmem:[#allocation10 + $0x20] sm:$0xf]
    %v382 = vld [vmem:[#allocation10 + $0x24] sm:$0xf]
    %v383 = vld [vmem:[#allocation10 + $0x28] sm:$0xf]
    %v384 = vld [vmem:[#allocation10 + $0x2c] sm:$0xf]
    %v385 = vld [vmem:[#allocation10 + $0x30] sm:$0xf]
    %v386 = vld [vmem:[#allocation10 + $0x34] sm:$0xf]
    %v387 = vld [vmem:[#allocation10 + $0x38] sm:$0xf]
    %v388 = vld [vmem:[#allocation10 + $0x3c] sm:$0xf]
    %v389 = vld [vmem:[%s6] sm:$0x1]
    %v391 = vperm.slane %v389, 0
    %v409 = vunpack.c.l.b16 %v373
    %v410 = vunpack.c.l.b16 %v374
    %v411 = vunpack.c.l.b16 %v375
    %v412 = vunpack.c.l.b16 %v376
    %v413 = vunpack.c.l.b16 %v377
    %v414 = vunpack.c.l.b16 %v378
    %v415 = vunpack.c.l.b16 %v379
    %v416 = vunpack.c.l.b16 %v380
    %v417 = vunpack.c.l.b16 %v381
    %v418 = vunpack.c.l.b16 %v382
    %v419 = vunpack.c.l.b16 %v383
    %v420 = vunpack.c.l.b16 %v384
    %v421 = vunpack.c.l.b16 %v385
    %v422 = vunpack.c.l.b16 %v386
    %v423 = vunpack.c.l.b16 %v387
    %v424 = vunpack.c.l.b16 %v388
    %v425 = vpack.c.b16 %v410, %v409
    %v426 = vpack.c.b16 %v412, %v411
    %v427 = vpack.c.b16 %v414, %v413
    %v428 = vpack.c.b16 %v416, %v415
    %v429 = vpack.c.b16 %v418, %v417
    %v430 = vpack.c.b16 %v420, %v419
    %v431 = vpack.c.b16 %v422, %v421
    %v432 = vpack.c.b16 %v424, %v423
    %441 = vmatpush.bf16.msra.mxu0 %v432
    %442 = vmatpush.bf16.msra.mxu0 %v431
    %443 = vmatpush.bf16.msra.mxu0 %v430
    %444 = vmatpush.bf16.msra.mxu0 %v429
    %445 = vmatpush.bf16.msra.mxu0 %v428
    %446 = vmatpush.bf16.msra.mxu0 %v427
    %447 = vmatpush.bf16.msra.mxu0 %v426
    %448 = vmatpush.bf16.msra.mxu0 %v425
    %449 = vmatmul.bf16.gmra.mxu0 %v372
    %v450 = vpop.f32.mrf.mxu0
    %v451 = vadd.f32 %v391, %v450
    %v452 = vpop.f32.mrf.mxu0
    %v453 = vadd.f32 %v391, %v452
    %454 = vdwg.mxu0
    %v455 = vand.u32 2147483647, %v451
    %v456 = vand.u32 2147483647, %v453
    %v457 = vsub.f32 0.0, %v455
    %v458 = vsub.f32 0.0, %v456
    %v459 = vmul.f32 %v457, 1.442695
    %v460 = vpow.pop %v459
    %v461 = vmul.f32 %v458, 1.442695
    %v462 = vpow.pop %v461
    %vm463 = vcmp.ge.f32.partialorder %v451, 0.0
    %vm464 = vcmp.ge.f32.partialorder %v453, 0.0
    %v465 = vsel %vm463, 1.0, %v460
    %v466 = vsel %vm464, 1.0, %v462
    %v467 = vadd.f32 %v460, 1.0
    %v468 = vadd.f32 %v462, 1.0
    %v469 = vrcp.pop %v467
    %v470 = vmul.f32 %v467, %v469
    %v471 = vsub.f32 1.0, %v470
    %v472 = vmul.f32 %v469, %v471
    %v473 = vadd.f32 %v469, %v472
    %vm474 = vweird.f32 %v467
    %vm475 = vweird.f32 %v469
    %vm476 = vmor %vm474, %vm475
    %v477 = vsel %vm476, %v469, %v473
    %v478 = vand.u32 2147483647, %v467
    %vm479 = vcmp.eq.f32.partialorder %v478, 8.507059e+37
    %v480 = vand.u32 %v467, 2147483648
    %v481 = vor.u32 1.1754944e-38, %v480
    %v482 = vsel %vm479, %v481, %v477
    %v483 = vmul.f32 %v465, %v482
    %v484 = vrcp.pop %v468
    %v485 = vmul.f32 %v468, %v484
    %v486 = vsub.f32 1.0, %v485
    %v487 = vmul.f32 %v484, %v486
    %v488 = vadd.f32 %v484, %v487
    %vm489 = vweird.f32 %v468
    %vm490 = vweird.f32 %v484
    %vm491 = vmor %vm489, %vm490
    %v492 = vsel %vm491, %v484, %v488
    %v493 = vand.u32 2147483647, %v468
    %vm494 = vcmp.eq.f32.partialorder %v493, 8.507059e+37
    %v495 = vand.u32 %v468, 2147483648
    %v496 = vor.u32 1.1754944e-38, %v495
    %v497 = vsel %vm494, %v496, %v492
    %v498 = vmul.f32 %v466, %v497
    %v499 = vpack.c.bf16 %v483, %v483
    %v500 = vpack.c.bf16 %v498, %v498
    %501 = vst [vmem:[#allocation11] sm:$0xf] %v499
    %502 = vst [vmem:[#allocation11 + $0x4] sm:$0xf] %v500
    // Predicated region
    $region50: #{tpu_custom_call.1} parent=1 // pred_check
      _
    $region51: #{tpu_custom_call.1} parent=1 // pred_check_branch
      %504 = sbr.rel (0) target = $region53
    $region52: #{tpu_custom_call.1} parent=1 // pred_region
      %506 = vsyncadd [#allocation4], 0
      %s507 = sshll.u32 [#allocation11], 4
      %s508 = int_to_ptr.vmem [resolvable:$true] %s507
      %s509 = sshll.u32 %s7, 4
      %s510 = int_to_ptr.hbm [resolvable:$true] %s509
      %515 = dma.vmem_to_hbm [thread:$0]  %s508, 128, %s510, [#allocation4], 64, 64, 4
    $region53: #{tpu_custom_call.1} parent=1 // pred_fallthru
      _
    // Predicated region
    $region54: #{tpu_custom_call.1} parent=1 // pred_check
      _
    $region55: #{tpu_custom_call.1} parent=1 // pred_check_branch
      %517 = sbr.rel (0) target = $region57
    $region56: #{tpu_custom_call.1} parent=1 // pred_region
      %519 = dma.done [#allocation4], 128
    $region57: #{tpu_custom_call.1} parent=1 // pred_fallthru
      _
    %520 = vsyncpa [#allocation3], 1
    %521 = vsyncpa [#allocation6], 1
    %522 = vsyncpa [#allocation9], 1
    %523 = vsyncpa [#allocation4], 1

// kernel: tpu_custom_call.1
$region0: #{tpu_custom_call.1}
  #allocation0 [shape = 'u32[]', space=smem, size = 0x4, offset = 0x4, fixed_abs, tag = 'smem constant byte address 0x4 - core index']
  #allocation1 [shape = 'u32[72,128]{1,0:T(1,128)}', space=vmem, size = 0x9000, scoped, tag = 'internal scratch']
  %s0 = inlined_call_operand.hbm [shape: bf16[16,256], index: 0, kind: input, shape index: {}]
  %s1 = inlined_call_operand.hbm [shape: bf16[16,128], index: 1, kind: input, shape index: {}]
  %s2 = inlined_call_operand.hbm [shape: bf16[256,128], index: 2, kind: input, shape index: {}]
  %s3 = inlined_call_operand.hbm [shape: bf16[128,128], index: 3, kind: input, shape index: {}]
  %s4 = inlined_call_operand.vmem [shape: f32[1,128], index: 4, kind: input, shape index: {}]
  %s5 = inlined_call_operand.hbm [shape: bf16[128,128], index: 5, kind: input, shape index: {}]
  %s6 = inlined_call_operand.vmem [shape: f32[1,128], index: 6, kind: input, shape index: {}]
  %s7 = inlined_call_operand.hbm [shape: bf16[16,128], index: 7, kind: output, shape index: {}]
  %s8 = sld [smem:[#allocation0]]
  $region58: #{tpu_custom_call.1} parent=0
    _
  %s10 = ssub.s32 1, %s8
  %s11 = scalar_select 0, %s10, %s8
  $region1: #{tpu_custom_call.1} parent=0
    #allocation2 [shape = 'u8[8192]{0}', space=vmem, size = 0x2000, scoped, tag = 'input window, operand 0, single buffered']
    #allocation3 [shape = 's32[1]{0}', space=sflag, size = 0x4, scoped, tag = 'scoped memory for tpu_custom_call.1']
    #allocation4 [shape = 's32[1]{0}', space=sflag, size = 0x4, scoped, tag = 'scoped memory for tpu_custom_call.1']
    #allocation5 [shape = 'u8[4096]{0}', space=vmem, size = 0x1000, scoped, tag = 'input window, operand 1, single buffered']
    #allocation6 [shape = 's32[1]{0}', space=sflag, size = 0x4, scoped, tag = 'scoped memory for tpu_custom_call.1']
    #allocation7 [shape = 'u8[65536]{0}', space=vmem, size = 0x10000, scoped, tag = 'input window, operand 2, single buffered']
    #allocation8 [shape = 'u8[32768]{0}', space=vmem, size = 0x8000, scoped, tag = 'input window, operand 3, single buffered']
    #allocation9 [shape = 's32[1]{0}', space=sflag, size = 0x4, scoped, tag = 'scoped memory for tpu_custom_call.1']
    #allocation10 [shape = 'u8[32768]{0}', space=vmem, size = 0x8000, scoped, tag = 'input window, operand 5, single buffered']
    #allocation11 [shape = 'u8[4096]{0}', space=vmem, size = 0x1000, scoped, tag = 'output window, operand 0, single buffered']
    %12 = vsyncpa [#allocation3], 0
    %13 = vsyncpa [#allocation6], 0
    %14 = vsyncpa [#allocation9], 0
    %15 = vsyncpa [#allocation4], 0
    // Predicated region
    $region2: #{tpu_custom_call.1} parent=1 // pred_check
      _
    $region3: #{tpu_custom_call.1} parent=1 // pred_check_branch
      %17 = sbr.rel (0) target = $region5
    $region4: #{tpu_custom_call.1} parent=1 // pred_region
      %19 = vsyncadd [#allocation3], 0
      %s20 = sshll.u32 %s0, 4
      %s21 = int_to_ptr.hbm [resolvable:$true] %s20
      %s22 = sshll.u32 [#allocation2], 4
      %s23 = int_to_ptr.vmem [resolvable:$true] %s22
      %28 = dma.hbm_to_vmem [thread:$0]  %s21, 256, %s23, [#allocation3], 128, 128, 8
    $region5: #{tpu_custom_call.1} parent=1 // pred_fallthru
      _
    // Predicated region
    $region6: #{tpu_custom_call.1} parent=1 // pred_check
      _
    $region7: #{tpu_custom_call.1} parent=1 // pred_check_branch
      %30 = sbr.rel (0) target = $region9
    $region8: #{tpu_custom_call.1} parent=1 // pred_region
      %32 = vsyncadd [#allocation6], 0
      %s33 = sshll.u32 %s1, 4
      %s34 = int_to_ptr.hbm [resolvable:$true] %s33
      %s35 = sshll.u32 [#allocation5], 4
      %s36 = int_to_ptr.vmem [resolvable:$true] %s35
      %41 = dma.hbm_to_vmem [thread:$0]  %s34, 128, %s36, [#allocation6], 64, 64, 4
    $region9: #{tpu_custom_call.1} parent=1 // pred_fallthru
      _
    // Predicated region
    $region10: #{tpu_custom_call.1} parent=1 // pred_check
      _
    $region11: #{tpu_custom_call.1} parent=1 // pred_check_branch
      %43 = sbr.rel (0) target = $region13
    $region12: #{tpu_custom_call.1} parent=1 // pred_region
      %45 = vsyncadd [#allocation6], 0
      %s46 = sshll.u32 %s2, 4
      %s47 = int_to_ptr.hbm [resolvable:$true] %s46
      %s48 = sshll.u32 [#allocation7], 4
      %s49 = int_to_ptr.vmem [resolvable:$true] %s48
      %54 = dma.hbm_to_vmem [thread:$0]  %s47, 2048, %s49, [#allocation6], 64, 64, 4
    $region13: #{tpu_custom_call.1} parent=1 // pred_fallthru
      _
    // Predicated region
    $region14: #{tpu_custom_call.1} parent=1 // pred_check
      _
    $region15: #{tpu_custom_call.1} parent=1 // pred_check_branch
      %56 = sbr.rel (0) target = $region17
    $region16: #{tpu_custom_call.1} parent=1 // pred_region
      %58 = vsyncadd [#allocation9], 0
      %s59 = sshll.u32 %s3, 4
      %s60 = int_to_ptr.hbm [resolvable:$true] %s59
      %s61 = sshll.u32 [#allocation8], 4
      %s62 = int_to_ptr.vmem [resolvable:$true] %s61
      %67 = dma.hbm_to_vmem [thread:$0]  %s60, 1024, %s62, [#allocation9], 64, 64, 4
    $region17: #{tpu_custom_call.1} parent=1 // pred_fallthru
      _
    // Predicated region
    $region18: #{tpu_custom_call.1} parent=1 // pred_check
      _
    $region19: #{tpu_custom_call.1} parent=1 // pred_check_branch
      %69 = sbr.rel (0) target = $region21
    $region20: #{tpu_custom_call.1} parent=1 // pred_region
      _
    $region21: #{tpu_custom_call.1} parent=1 // pred_fallthru
      _
    // Predicated region
    $region22: #{tpu_custom_call.1} parent=1 // pred_check
      _
    $region23: #{tpu_custom_call.1} parent=1 // pred_check_branch
      %71 = sbr.rel (0) target = $region25
    $region24: #{tpu_custom_call.1} parent=1 // pred_region
      %73 = vsyncadd [#allocation9], 0
      %s74 = sshll.u32 %s5, 4
      %s75 = int_to_ptr.hbm [resolvable:$true] %s74
      %s76 = sshll.u32 [#allocation10], 4
      %s77 = int_to_ptr.vmem [resolvable:$true] %s76
      %82 = dma.hbm_to_vmem [thread:$0]  %s75, 1024, %s77, [#allocation9], 64, 64, 4
    $region25: #{tpu_custom_call.1} parent=1 // pred_fallthru
      _
    // Predicated region
    $region26: #{tpu_custom_call.1} parent=1 // pred_check
      _
    $region27: #{tpu_custom_call.1} parent=1 // pred_check_branch
      %84 = sbr.rel (0) target = $region29
    $region28: #{tpu_custom_call.1} parent=1 // pred_region
      _
    $region29: #{tpu_custom_call.1} parent=1 // pred_fallthru
      _
    // Predicated region
    $region30: #{tpu_custom_call.1} parent=1 // pred_check
      _
    $region31: #{tpu_custom_call.1} parent=1 // pred_check_branch
      %86 = sbr.rel (0) target = $region33
    $region32: #{tpu_custom_call.1} parent=1 // pred_region
      %88 = dma.done [#allocation3], 256
    $region33: #{tpu_custom_call.1} parent=1 // pred_fallthru
      _
    // Predicated region
    $region34: #{tpu_custom_call.1} parent=1 // pred_check
      _
    $region35: #{tpu_custom_call.1} parent=1 // pred_check_branch
      %90 = sbr.rel (0) target = $region37
    $region36: #{tpu_custom_call.1} parent=1 // pred_region
      %92 = dma.done [#allocation6], 128
    $region37: #{tpu_custom_call.1} parent=1 // pred_fallthru
      _
    // Predicated region
    $region38: #{tpu_custom_call.1} parent=1 // pred_check
      _
    $region39: #{tpu_custom_call.1} parent=1 // pred_check_branch
      %94 = sbr.rel (0) target = $region41
    $region40: #{tpu_custom_call.1} parent=1 // pred_region
      %96 = dma.done [#allocation6], 2048
    $region41: #{tpu_custom_call.1} parent=1 // pred_fallthru
      _
    // Predicated region
    $region42: #{tpu_custom_call.1} parent=1 // pred_check
      _
    $region43: #{tpu_custom_call.1} parent=1 // pred_check_branch
      %98 = sbr.rel (0) target = $region45
    $region44: #{tpu_custom_call.1} parent=1 // pred_region
      %100 = dma.done [#allocation9], 1024
    $region45: #{tpu_custom_call.1} parent=1 // pred_fallthru
      _
    // Predicated region
    $region46: #{tpu_custom_call.1} parent=1 // pred_check
      _
    $region47: #{tpu_custom_call.1} parent=1 // pred_check_branch
      %102 = sbr.rel (0) target = $region49
    $region48: #{tpu_custom_call.1} parent=1 // pred_region
      %104 = dma.done [#allocation9], 1024
    $region49: #{tpu_custom_call.1} parent=1 // pred_fallthru
      _
    %v105 = vld [vmem:[#allocation2] sm:$0xff]
    %v106 = vld [vmem:[#allocation2 + $0x8] sm:$0xff]
    %v107 = vld [vmem:[#allocation7] sm:$0xf]
    %v108 = vld [vmem:[#allocation7 + $0x4] sm:$0xf]
    %v109 = vld [vmem:[#allocation7 + $0x8] sm:$0xf]
    %v110 = vld [vmem:[#allocation7 + $0xc] sm:$0xf]
    %v111 = vld [vmem:[#allocation7 + $0x10] sm:$0xf]
    %v112 = vld [vmem:[#allocation7 + $0x14] sm:$0xf]
    %v113 = vld [vmem:[#allocation7 + $0x18] sm:$0xf]
    %v114 = vld [vmem:[#allocation7 + $0x1c] sm:$0xf]
    %v115 = vld [vmem:[#allocation7 + $0x20] sm:$0xf]
    %v116 = vld [vmem:[#allocation7 + $0x24] sm:$0xf]
    %v117 = vld [vmem:[#allocation7 + $0x28] sm:$0xf]
    %v118 = vld [vmem:[#allocation7 + $0x2c] sm:$0xf]
    %v119 = vld [vmem:[#allocation7 + $0x30] sm:$0xf]
    %v120 = vld [vmem:[#allocation7 + $0x34] sm:$0xf]
    %v121 = vld [vmem:[#allocation7 + $0x38] sm:$0xf]
    %v122 = vld [vmem:[#allocation7 + $0x3c] sm:$0xf]
    %v123 = vld [vmem:[#allocation7 + $0x40] sm:$0xf]
    %v124 = vld [vmem:[#allocation7 + $0x44] sm:$0xf]
    %v125 = vld [vmem:[#allocation7 + $0x48] sm:$0xf]
    %v126 = vld [vmem:[#allocation7 + $0x4c] sm:$0xf]
    %v127 = vld [vmem:[#allocation7 + $0x50] sm:$0xf]
    %v128 = vld [vmem:[#allocation7 + $0x54] sm:$0xf]
    %v129 = vld [vmem:[#allocation7 + $0x58] sm:$0xf]
    %v130 = vld [vmem:[#allocation7 + $0x5c] sm:$0xf]
    %v131 = vld [vmem:[#allocation7 + $0x60] sm:$0xf]
    %v132 = vld [vmem:[#allocation7 + $0x64] sm:$0xf]
    %v133 = vld [vmem:[#allocation7 + $0x68] sm:$0xf]
    %v134 = vld [vmem:[#allocation7 + $0x6c] sm:$0xf]
    %v135 = vld [vmem:[#allocation7 + $0x70] sm:$0xf]
    %v136 = vld [vmem:[#allocation7 + $0x74] sm:$0xf]
    %v137 = vld [vmem:[#allocation7 + $0x78] sm:$0xf]
    %v138 = vld [vmem:[#allocation7 + $0x7c] sm:$0xf]
    %v139 = vld [vmem:[#allocation5] sm:$0xf]
    %v140 = vld [vmem:[#allocation5 + $0x4] sm:$0xf]
    %v141 = vunpack.c.l.bf16 %v139
    %v142 = vunpack.c.l.bf16 %v140
    %v145 = vunpack.c.l.b16 %v105
    %v146 = vunpack.c.h.b16 %v105
    %v147 = vunpack.c.l.b16 %v106
    %v148 = vunpack.c.h.b16 %v106
    %v149 = vpack.c.b16 %v147, %v145
    %v150 = vpack.c.b16 %v148, %v146
    %v185 = vunpack.c.l.b16 %v107
    %v186 = vunpack.c.l.b16 %v108
    %v187 = vunpack.c.l.b16 %v109
    %v188 = vunpack.c.l.b16 %v110
    %v189 = vunpack.c.l.b16 %v111
    %v190 = vunpack.c.l.b16 %v112
    %v191 = vunpack.c.l.b16 %v113
    %v192 = vunpack.c.l.b16 %v114
    %v193 = vunpack.c.l.b16 %v115
    %v194 = vunpack.c.l.b16 %v116
    %v195 = vunpack.c.l.b16 %v117
    %v196 = vunpack.c.l.b16 %v118
    %v197 = vunpack.c.l.b16 %v119
    %v198 = vunpack.c.l.b16 %v120
    %v199 = vunpack.c.l.b16 %v121
    %v200 = vunpack.c.l.b16 %v122
    %v201 = vunpack.c.l.b16 %v123
    %v202 = vunpack.c.l.b16 %v124
    %v203 = vunpack.c.l.b16 %v125
    %v204 = vunpack.c.l.b16 %v126
    %v205 = vunpack.c.l.b16 %v127
    %v206 = vunpack.c.l.b16 %v128
    %v207 = vunpack.c.l.b16 %v129
    %v208 = vunpack.c.l.b16 %v130
    %v209 = vunpack.c.l.b16 %v131
    %v210 = vunpack.c.l.b16 %v132
    %v211 = vunpack.c.l.b16 %v133
    %v212 = vunpack.c.l.b16 %v134
    %v213 = vunpack.c.l.b16 %v135
    %v214 = vunpack.c.l.b16 %v136
    %v215 = vunpack.c.l.b16 %v137
    %v216 = vunpack.c.l.b16 %v138
    %v217 = vpack.c.b16 %v186, %v185
    %v218 = vpack.c.b16 %v188, %v187
    %v219 = vpack.c.b16 %v190, %v189
    %v220 = vpack.c.b16 %v192, %v191
    %v221 = vpack.c.b16 %v194, %v193
    %v222 = vpack.c.b16 %v196, %v195
    %v223 = vpack.c.b16 %v198, %v197
    %v224 = vpack.c.b16 %v200, %v199
    %v225 = vpack.c.b16 %v202, %v201
    %v226 = vpack.c.b16 %v204, %v203
    %v227 = vpack.c.b16 %v206, %v205
    %v228 = vpack.c.b16 %v208, %v207
    %v229 = vpack.c.b16 %v210, %v209
    %v230 = vpack.c.b16 %v212, %v211
    %v231 = vpack.c.b16 %v214, %v213
    %v232 = vpack.c.b16 %v216, %v215
    %249 = vmatpush.bf16.msra.mxu0 %v224
    %250 = vmatpush.bf16.msra.mxu0 %v223
    %251 = vmatpush.bf16.msra.mxu0 %v222
    %252 = vmatpush.bf16.msra.mxu0 %v221
    %253 = vmatpush.bf16.msra.mxu0 %v220
    %254 = vmatpush.bf16.msra.mxu0 %v219
    %255 = vmatpush.bf16.msra.mxu0 %v218
    %256 = vmatpush.bf16.msra.mxu0 %v217
    %257 = vmatmul.bf16.gmra.mxu0 %v149
    %v258 = vpop.f32.mrf.mxu0
    %v259 = vadd.f32 %v141, %v258
    %v260 = vpop.f32.mrf.mxu0
    %v261 = vadd.f32 %v142, %v260
    %262 = vdwg.mxu0
    %263 = vmatpush.bf16.msra.mxu0 %v232
    %264 = vmatpush.bf16.msra.mxu0 %v231
    %265 = vmatpush.bf16.msra.mxu0 %v230
    %266 = vmatpush.bf16.msra.mxu0 %v229
    %267 = vmatpush.bf16.msra.mxu0 %v228
    %268 = vmatpush.bf16.msra.mxu0 %v227
    %269 = vmatpush.bf16.msra.mxu0 %v226
    %270 = vmatpush.bf16.msra.mxu0 %v225
    %271 = vmatmul.bf16.gmra.mxu0 %v150
    %v272 = vpop.f32.mrf.mxu0
    %v273 = vadd.f32 %v259, %v272
    %v274 = vpop.f32.mrf.mxu0
    %v275 = vadd.f32 %v261, %v274
    %276 = vdwg.mxu0
    %vm277 = vcmp.gt.f32.partialorder %v273, 0.0
    %vm278 = vcmp.gt.f32.partialorder %v275, 0.0
    %v279 = vmul.f32 %v273, 0.2
    %v280 = vmul.f32 %v275, 0.2
    %v281 = vsel %vm277, %v273, %v279
    %v282 = vsel %vm278, %v275, %v280
    %v283 = vpack.c.bf16 %v282, %v281
    %v284 = vld [vmem:[#allocation8] sm:$0xf]
    %v285 = vld [vmem:[#allocation8 + $0x4] sm:$0xf]
    %v286 = vld [vmem:[#allocation8 + $0x8] sm:$0xf]
    %v287 = vld [vmem:[#allocation8 + $0xc] sm:$0xf]
    %v288 = vld [vmem:[#allocation8 + $0x10] sm:$0xf]
    %v289 = vld [vmem:[#allocation8 + $0x14] sm:$0xf]
    %v290 = vld [vmem:[#allocation8 + $0x18] sm:$0xf]
    %v291 = vld [vmem:[#allocation8 + $0x1c] sm:$0xf]
    %v292 = vld [vmem:[#allocation8 + $0x20] sm:$0xf]
    %v293 = vld [vmem:[#allocation8 + $0x24] sm:$0xf]
    %v294 = vld [vmem:[#allocation8 + $0x28] sm:$0xf]
    %v295 = vld [vmem:[#allocation8 + $0x2c] sm:$0xf]
    %v296 = vld [vmem:[#allocation8 + $0x30] sm:$0xf]
    %v297 = vld [vmem:[#allocation8 + $0x34] sm:$0xf]
    %v298 = vld [vmem:[#allocation8 + $0x38] sm:$0xf]
    %v299 = vld [vmem:[#allocation8 + $0x3c] sm:$0xf]
    %v300 = vld [vmem:[%s4] sm:$0x1]
    %v302 = vperm.slane %v300, 0
    %v320 = vunpack.c.l.b16 %v284
    %v321 = vunpack.c.l.b16 %v285
    %v322 = vunpack.c.l.b16 %v286
    %v323 = vunpack.c.l.b16 %v287
    %v324 = vunpack.c.l.b16 %v288
    %v325 = vunpack.c.l.b16 %v289
    %v326 = vunpack.c.l.b16 %v290
    %v327 = vunpack.c.l.b16 %v291
    %v328 = vunpack.c.l.b16 %v292
    %v329 = vunpack.c.l.b16 %v293
    %v330 = vunpack.c.l.b16 %v294
    %v331 = vunpack.c.l.b16 %v295
    %v332 = vunpack.c.l.b16 %v296
    %v333 = vunpack.c.l.b16 %v297
    %v334 = vunpack.c.l.b16 %v298
    %v335 = vunpack.c.l.b16 %v299
    %v336 = vpack.c.b16 %v321, %v320
    %v337 = vpack.c.b16 %v323, %v322
    %v338 = vpack.c.b16 %v325, %v324
    %v339 = vpack.c.b16 %v327, %v326
    %v340 = vpack.c.b16 %v329, %v328
    %v341 = vpack.c.b16 %v331, %v330
    %v342 = vpack.c.b16 %v333, %v332
    %v343 = vpack.c.b16 %v335, %v334
    %352 = vmatpush.bf16.msra.mxu0 %v343
    %353 = vmatpush.bf16.msra.mxu0 %v342
    %354 = vmatpush.bf16.msra.mxu0 %v341
    %355 = vmatpush.bf16.msra.mxu0 %v340
    %356 = vmatpush.bf16.msra.mxu0 %v339
    %357 = vmatpush.bf16.msra.mxu0 %v338
    %358 = vmatpush.bf16.msra.mxu0 %v337
    %359 = vmatpush.bf16.msra.mxu0 %v336
    %360 = vmatmul.bf16.gmra.mxu0 %v283
    %v361 = vpop.f32.mrf.mxu0
    %v362 = vadd.f32 %v302, %v361
    %v363 = vpop.f32.mrf.mxu0
    %v364 = vadd.f32 %v302, %v363
    %365 = vdwg.mxu0
    %vm366 = vcmp.gt.f32.partialorder %v362, 0.0
    %vm367 = vcmp.gt.f32.partialorder %v364, 0.0
    %v368 = vmul.f32 %v362, 0.2
    %v369 = vmul.f32 %v364, 0.2
    %v370 = vsel %vm366, %v362, %v368
    %v371 = vsel %vm367, %v364, %v369
    %v372 = vpack.c.bf16 %v371, %v370
    %v373 = vld [vmem:[#allocation10] sm:$0xf]
    %v374 = vld [vmem:[#allocation10 + $0x4] sm:$0xf]
    %v375 = vld [vmem:[#allocation10 + $0x8] sm:$0xf]
    %v376 = vld [vmem:[#allocation10 + $0xc] sm:$0xf]
    %v377 = vld [vmem:[#allocation10 + $0x10] sm:$0xf]
    %v378 = vld [vmem:[#allocation10 + $0x14] sm:$0xf]
    %v379 = vld [vmem:[#allocation10 + $0x18] sm:$0xf]
    %v380 = vld [vmem:[#allocation10 + $0x1c] sm:$0xf]
    %v381 = vld [vmem:[#allocation10 + $0x20] sm:$0xf]
    %v382 = vld [vmem:[#allocation10 + $0x24] sm:$0xf]
    %v383 = vld [vmem:[#allocation10 + $0x28] sm:$0xf]
    %v384 = vld [vmem:[#allocation10 + $0x2c] sm:$0xf]
    %v385 = vld [vmem:[#allocation10 + $0x30] sm:$0xf]
    %v386 = vld [vmem:[#allocation10 + $0x34] sm:$0xf]
    %v387 = vld [vmem:[#allocation10 + $0x38] sm:$0xf]
    %v388 = vld [vmem:[#allocation10 + $0x3c] sm:$0xf]
    %v389 = vld [vmem:[%s6] sm:$0x1]
    %v391 = vperm.slane %v389, 0
    %v409 = vunpack.c.l.b16 %v373
    %v410 = vunpack.c.l.b16 %v374
    %v411 = vunpack.c.l.b16 %v375
    %v412 = vunpack.c.l.b16 %v376
    %v413 = vunpack.c.l.b16 %v377
    %v414 = vunpack.c.l.b16 %v378
    %v415 = vunpack.c.l.b16 %v379
    %v416 = vunpack.c.l.b16 %v380
    %v417 = vunpack.c.l.b16 %v381
    %v418 = vunpack.c.l.b16 %v382
    %v419 = vunpack.c.l.b16 %v383
    %v420 = vunpack.c.l.b16 %v384
    %v421 = vunpack.c.l.b16 %v385
    %v422 = vunpack.c.l.b16 %v386
    %v423 = vunpack.c.l.b16 %v387
    %v424 = vunpack.c.l.b16 %v388
    %v425 = vpack.c.b16 %v410, %v409
    %v426 = vpack.c.b16 %v412, %v411
    %v427 = vpack.c.b16 %v414, %v413
    %v428 = vpack.c.b16 %v416, %v415
    %v429 = vpack.c.b16 %v418, %v417
    %v430 = vpack.c.b16 %v420, %v419
    %v431 = vpack.c.b16 %v422, %v421
    %v432 = vpack.c.b16 %v424, %v423
    %441 = vmatpush.bf16.msra.mxu0 %v432
    %442 = vmatpush.bf16.msra.mxu0 %v431
    %443 = vmatpush.bf16.msra.mxu0 %v430
    %444 = vmatpush.bf16.msra.mxu0 %v429
    %445 = vmatpush.bf16.msra.mxu0 %v428
    %446 = vmatpush.bf16.msra.mxu0 %v427
    %447 = vmatpush.bf16.msra.mxu0 %v426
    %448 = vmatpush.bf16.msra.mxu0 %v425
    %449 = vmatmul.bf16.gmra.mxu0 %v372
    %v450 = vpop.f32.mrf.mxu0
    %v451 = vadd.f32 %v391, %v450
    %v452 = vpop.f32.mrf.mxu0
    %v453 = vadd.f32 %v391, %v452
    %454 = vdwg.mxu0
    %v455 = vand.u32 2147483647, %v451
    %v456 = vand.u32 2147483647, %v453
    %v457 = vsub.f32 0.0, %v455
    %v458 = vsub.f32 0.0, %v456
    %v459 = vmul.f32 %v457, 1.442695
    %v460 = vpow.pop %v459
    %v461 = vmul.f32 %v458, 1.442695
    %v462 = vpow.pop %v461
    %vm463 = vcmp.ge.f32.partialorder %v451, 0.0
    %vm464 = vcmp.ge.f32.partialorder %v453, 0.0
    %v465 = vsel %vm463, 1.0, %v460
    %v466 = vsel %vm464, 1.0, %v462
    %v467 = vadd.f32 %v460, 1.0
    %v468 = vadd.f32 %v462, 1.0
    %v469 = vrcp.pop %v467
    %v470 = vmul.f32 %v467, %v469
    %v471 = vsub.f32 1.0, %v470
    %v472 = vmul.f32 %v469, %v471
    %v473 = vadd.f32 %v469, %v472
    %vm474 = vweird.f32 %v467
    %vm475 = vweird.f32 %v469
    %vm476 = vmor %vm474, %vm475
    %v477 = vsel %vm476, %v469, %v473
    %v478 = vand.u32 2147483647, %v467
    %vm479 = vcmp.eq.f32.partialorder %v478, 8.507059e+37
    %v480 = vand.u32 %v467, 2147483648
    %v481 = vor.u32 1.1754944e-38, %v480
    %v482 = vsel %vm479, %v481, %v477
    %v483 = vmul.f32 %v465, %v482
    %v484 = vrcp.pop %v468
    %v485 = vmul.f32 %v468, %v484
    %v486 = vsub.f32 1.0, %v485
    %v487 = vmul.f32 %v484, %v486
    %v488 = vadd.f32 %v484, %v487
    %vm489 = vweird.f32 %v468
    %vm490 = vweird.f32 %v484
    %vm491 = vmor %vm489, %vm490
    %v492 = vsel %vm491, %v484, %v488
    %v493 = vand.u32 2147483647, %v468
    %vm494 = vcmp.eq.f32.partialorder %v493, 8.507059e+37
    %v495 = vand.u32 %v468, 2147483648
    %v496 = vor.u32 1.1754944e-38, %v495
    %v497 = vsel %vm494, %v496, %v492
    %v498 = vmul.f32 %v466, %v497
    %v499 = vpack.c.bf16 %v483, %v483
    %v500 = vpack.c.bf16 %v498, %v498
    %501 = vst [vmem:[#allocation11] sm:$0xf] %v499
    %502 = vst [vmem:[#allocation11 + $0x4] sm:$0xf] %v500
    // Predicated region
    $region50: #{tpu_custom_call.1} parent=1 // pred_check
      _
    $region51: #{tpu_custom_call.1} parent=1 // pred_check_branch
      %504 = sbr.rel (0) target = $region53
    $region52: #{tpu_custom_call.1} parent=1 // pred_region
      %506 = vsyncadd [#allocation4], 0
      %s507 = sshll.u32 [#allocation11], 4
      %s508 = int_to_ptr.vmem [resolvable:$true] %s507
      %s509 = sshll.u32 %s7, 4
      %s510 = int_to_ptr.hbm [resolvable:$true] %s509
      %515 = dma.vmem_to_hbm [thread:$0]  %s508, 128, %s510, [#allocation4], 64, 64, 4
    $region53: #{tpu_custom_call.1} parent=1 // pred_fallthru
      _
    // Predicated region
    $region54: #{tpu_custom_call.1} parent=1 // pred_check
      _
    $region55: #{tpu_custom_call.1} parent=1 // pred_check_branch
      %517 = sbr.rel (0) target = $region57
    $region56: #{tpu_custom_call.1} parent=1 // pred_region
      %519 = dma.done [#allocation4], 128
    $region57: #{tpu_custom_call.1} parent=1 // pred_fallthru
      _
    %520 = vsyncpa [#allocation3], 1
    %521 = vsyncpa [#allocation6], 1
    %522 = vsyncpa [#allocation9], 1
    %523 = vsyncpa [#allocation4], 1

</llo_original>
